<compile_context>
chip_gen: v5e
topology: v5e:2x2
jax: 0.10.0
libtpu: 0.0.40
codegen_flags: <defaults>
</compile_context>

<pallas_src>
import functools

import jax
import jax.numpy as jnp
from jax import lax
from jax.experimental import pallas as pl
from jax.experimental.pallas import tpu as pltpu


_MAX_ACC_VREGS = 16  # f32 accumulator budget per time chunk (64-vreg file)


def _round_up(x, m):
    return (x + m - 1) // m * m


def _physical_vmem_bytes():
    """Per-core VMEM capacity; conservative v7x default if the query fails."""
    try:
        info = pltpu.get_tpu_info()
        v = getattr(info, "vmem_capacity_bytes", None)
        if v:
            return int(v)
    except Exception:
        pass
    return 64 * 1024 * 1024


def _dwconv1d_kernel(x_ref, w_ref, scale_ref, bias_ref, o_ref, xp_ref, *,
                     ksz, pad, lead, t_in, t_out, t_chunk, activation):
    """One (channel-tile, batch) grid step.

    x_ref     : (1, t_in, c_tile)      input tile, channels lane-dense
    w_ref     : (ksz, c_tile)          f32 taps, one lane-dense row per tap
    scale_ref : (1, c_tile)            fused BN scale  (1.0 for plain conv)
    bias_ref  : (1, c_tile)            fused BN bias   (0.0 for plain conv)
    o_ref     : (1, t_out, c_tile)     output tile
    xp_ref    : (lead + t_in + pad, c_tile) f32 scratch, zero-edged copy
    """
    c_tile = o_ref.shape[2]
    base = lead - pad  # sublane row read by tap k == 0, output position 0

    # ---- stage once per tile: fuse the 'SAME' zero padding, upcast to f32 ---
    if pad > 0:
        zeros = jnp.zeros((pad, c_tile), jnp.float32)
        xp_ref[base:lead, :] = zeros                          # left conv pad
        xp_ref[lead + t_in:lead + t_in + pad, :] = zeros      # right conv pad
    xp_ref[lead:lead + t_in, :] = x_ref[0].astype(jnp.float32)

    # ---- hoisted per-tile values (not per tap) ------------------------------
    w = w_ref[...].astype(jnp.float32)          # (ksz, c_tile)
    scale = scale_ref[...].astype(jnp.float32)  # (1, c_tile)
    bias = bias_ref[...].astype(jnp.float32)    # (1, c_tile)

    # ---- hot loop: time chunks (acc stays in vregs), taps innermost ---------
    # Tap slices are sublane offsets only (channels stay lane-aligned), so the
    # VPU multiply-adds are the binding unit, not the XLU or the store slot.
    # TODO(synk): switch to a fori_loop over chunks for very long t_out.
    for t0 in range(0, t_out, t_chunk):
        cur = min(t_chunk, t_out - t0)
        s = base + t0
        acc = w[0:1, :] * xp_ref[s:s + cur, :]
        for k in range(1, ksz):
            acc = acc + w[k:k + 1, :] * xp_ref[s + k:s + k + cur, :]
        y = acc * scale + bias                   # inference BatchNorm
        if activation == "swish":
            y = y * (1.0 / (1.0 + jnp.exp(-y)))  # Swish (exp on the EUP)
        o_ref[0, t0:t0 + cur, :] = y.astype(o_ref.dtype)


def _choose_channel_tile(c_out, *, ksz, t_in, t_out, t_scratch, itemsize,
                         vmem_budget, target):
    """Channel (lane) tile whose double-buffered blocks + scratch fit `vmem_budget`.

    Legal tiles divide c_out and are a multiple of 128 lanes (or c_out itself,
    the full-dim escape hatch for tiny channel counts)."""

    def vmem_bytes(ct):
        lanes = _round_up(ct, 128)
        in_blk = _round_up(t_in, 8) * lanes * itemsize
        out_blk = _round_up(t_out, 8) * lanes * itemsize
        w_blk = _round_up(ksz, 8) * lanes * 4
        sb_blk = 2 * 8 * lanes * 4
        scratch = _round_up(t_scratch, 8) * lanes * 4
        return 2 * (in_blk + out_blk + w_blk + sb_blk) + scratch

    cands = sorted({ct for ct in range(128, c_out + 1, 128) if c_out % ct == 0}
                   | {c_out})
    fitting = [ct for ct in cands if vmem_bytes(ct) <= vmem_budget]
    if fitting:
        small = [ct for ct in fitting if ct <= target]
        ct = max(small) if small else min(fitting)
    else:
        ct = min(cands)  # caller validates against the physical cap and raises
    return ct, vmem_bytes(ct)


def _dwconv1d_btc_core(x_btc, w_kc, scale_c, bias_c, *, padding, activation):
    """(B, T, C_out) depthwise conv (+ optional fused scale/shift + Swish)."""
    b, t_in, c_out = x_btc.shape
    ksz = w_kc.shape[0]
    pad = int(padding)
    t_out = t_in + 2 * pad - ksz + 1
    assert t_out >= 1, "kernel does not cover the (padded) input"

    lead = _round_up(pad, 8) if pad > 0 else 0   # 8-aligned payload sublane
    t_scratch = lead + t_in + pad

    phys = _physical_vmem_bytes()
    budget = phys // 2                 # tiling budget: 32 MiB (v7x) / 64 MiB (v5e/v6e)
    cap = int(phys * 0.85)             # never request ~all of physical VMEM
    target = 256 if budget >= (48 << 20) else 128

    c_tile, vmem_needed = _choose_channel_tile(
        c_out, ksz=ksz, t_in=t_in, t_out=t_out, t_scratch=t_scratch,
        itemsize=x_btc.dtype.itemsize, vmem_budget=budget, target=target)
    if vmem_needed > cap:
        raise NotImplementedError(
            "depthwise_conv1d: a (T, c_tile) block does not fit VMEM; "
            "TODO(synk): time-tiling grid axis with a pad-wide halo.")
    n_ct = c_out // c_tile

    lane_groups = -(-c_tile // 128)
    t_chunk = max(8, (_MAX_ACC_VREGS // max(lane_groups, 1)) * 8)
    t_chunk = min(t_chunk, _round_up(t_out, 8))

    kernel = functools.partial(
        _dwconv1d_kernel, ksz=ksz, pad=pad, lead=lead, t_in=t_in,
        t_out=t_out, t_chunk=t_chunk, activation=activation)

    scale2 = scale_c.reshape(1, c_out).astype(jnp.float32)
    bias2 = bias_c.reshape(1, c_out).astype(jnp.float32)

    flops = 2 * b * c_out * t_out * ksz + 4 * b * c_out * t_out
    transc = b * c_out * t_out if activation == "swish" else 0
    bytes_accessed = (x_btc.size * x_btc.dtype.itemsize
                      + w_kc.size * 4 + 2 * c_out * 4
                      + b * c_out * t_out * x_btc.dtype.itemsize)
    vmem_limit = int(min(max(vmem_needed + (4 << 20), 32 << 20), cap))

    out = pl.pallas_call(
        kernel,
        out_shape=jax.ShapeDtypeStruct((b, t_out, c_out), x_btc.dtype),
        grid_spec=pltpu.PrefetchScalarGridSpec(
            num_scalar_prefetch=0,
            # Channel tiles outermost so the (tiny) weight/scale/bias blocks
            # stay resident while the batch axis streams through the pipeline.
            grid=(n_ct, b),
            in_specs=[
                pl.BlockSpec((1, t_in, c_tile), lambda c, bb: (bb, 0, c)),
                pl.BlockSpec((ksz, c_tile), lambda c, bb: (0, c)),
                pl.BlockSpec((1, c_tile), lambda c, bb: (0, c)),
                pl.BlockSpec((1, c_tile), lambda c, bb: (0, c)),
            ],
            out_specs=pl.BlockSpec((1, t_out, c_tile), lambda c, bb: (bb, 0, c)),
            scratch_shapes=[pltpu.VMEM((t_scratch, c_tile), jnp.float32)],
        ),
        compiler_params=pltpu.CompilerParams(
            dimension_semantics=("parallel", "parallel"),
            vmem_limit_bytes=vmem_limit,
        ),
        cost_estimate=pl.CostEstimate(
            flops=flops, transcendentals=transc, bytes_accessed=bytes_accessed),
    )(x_btc, w_kc.astype(jnp.float32), scale2, bias2)
    return out


def depthwise_conv1d(x, weight, *, stride=1, padding=0):
    """torch.nn.Conv1d(groups=C_in, bias=False) semantics.

    x: (B, C_in, T), weight: (C_out, 1, ksz) with C_out == K*C_in.
    Returns (B, C_out, T_out) in x.dtype (f32 accumulation inside)."""
    if stride != 1:
        # TODO(synk): stride > 1 (unused by ConformerBlock).
        raise NotImplementedError("depthwise_conv1d: only stride=1 is supported")
    b, c_in, t_in = x.shape
    c_out, one, ksz = weight.shape
    assert one == 1 and c_out % c_in == 0
    mult = c_out // c_in
    if mult > 1:
        # TODO(synk): replicate on the VMEM tile instead; ConformerBlock uses K==1.
        x = jnp.repeat(x, mult, axis=1)                    # (B, C_out, T)
    # TODO(synk): inside ConformerBlock the activations are already (B, T, C);
    # call depthwise_conv1d_bn_swish_btc directly and skip both transposes.
    x_btc = jnp.transpose(x, (0, 2, 1))
    w_kc = jnp.transpose(weight[:, 0, :], (1, 0))          # (ksz, C_out) lane-dense
    ones = jnp.ones((c_out,), jnp.float32)
    zeros = jnp.zeros((c_out,), jnp.float32)
    y_btc = _dwconv1d_btc_core(x_btc, w_kc, ones, zeros,
                               padding=padding, activation=None)
    return jnp.transpose(y_btc, (0, 2, 1))


def depthwise_conv1d_bn_swish_btc(x_btc, weight, bn_gamma, bn_beta, bn_mean,
                                  bn_var, *, padding, eps=1e-5):
    """Fused DepthwiseConv1d -> BatchNorm1d(eval) -> Swish of ConformerConvModule.

    x_btc: (B, T, C) (ConformerBlock-native layout), weight: (C, 1, ksz).
    TODO(synk): training-mode BatchNorm (batch statistics) is not fused."""
    c_out = weight.shape[0]
    assert x_btc.shape[2] == c_out, "fused path requires K == 1 (C_out == C_in)"
    w_kc = jnp.transpose(weight[:, 0, :], (1, 0))
    scale = (bn_gamma / jnp.sqrt(bn_var + eps)).astype(jnp.float32)
    bias = (bn_beta - bn_mean * scale).astype(jnp.float32)
    return _dwconv1d_btc_core(x_btc, w_kc, scale, bias,
                              padding=padding, activation="swish")


def _ref_dwconv_bct(x_bct, weight, pad):
    return lax.conv_general_dilated(
        x_bct, weight, window_strides=(1,), padding=[(pad, pad)],
        dimension_numbers=("NCH", "OIH", "NCH"),
        feature_group_count=x_bct.shape[1])


if __name__ == "__main__":
    root = jax.random.PRNGKey(0)

    # ---- plain depthwise conv (nn.Conv1d semantics), several configs --------
    cases = [
        # ConformerBlock configuration: K = 1, kernel_size = 31, 'SAME' padding.
        ("conformer_same_k31", 2, 16, 1, 31, 15, 48),
        ("tiny_k3",            2,  8, 1,  3,  1, 16),
        # Grouped K = 2 path of the standalone DepthwiseConv1d module.
        ("grouped_k2",         2,  4, 2,  3,  1, 16),
    ]
    for idx, (name, b, c_in, mult, ksz, pad, t) in enumerate(cases):
        kx, kw = jax.random.split(jax.random.fold_in(root, idx))
        c_out = c_in * mult
        x = jax.random.normal(kx, (b, c_in, t), dtype=jnp.float32)
        bound = 1.0 / (ksz ** 0.5)
        w = jax.random.uniform(kw, (c_out, 1, ksz), jnp.float32,
                               minval=-bound, maxval=bound)
        out = jax.block_until_ready(depthwise_conv1d(x, w, stride=1, padding=pad))
        ref = _ref_dwconv_bct(x, w, pad)
        assert out.shape == ref.shape, (name, out.shape, ref.shape)
        assert jnp.allclose(out, ref, atol=1e-4, rtol=1e-4), name

    # ---- fused conv + BatchNorm(eval) + Swish, (B, T, C) hot-path API -------
    b, c, ksz, pad, t = 2, 16, 31, 15, 48
    ks = jax.random.split(jax.random.fold_in(root, 100), 6)
    x_btc = jax.random.normal(ks[0], (b, t, c), dtype=jnp.float32)
    bound = 1.0 / (ksz ** 0.5)
    w = jax.random.uniform(ks[1], (c, 1, ksz), jnp.float32, -bound, bound)
    gamma = jax.random.uniform(ks[2], (c,), jnp.float32, 0.5, 1.5)
    beta = jax.random.normal(ks[3], (c,), dtype=jnp.float32) * 0.1
    mean = jax.random.normal(ks[4], (c,), dtype=jnp.float32) * 0.1
    var = jax.random.uniform(ks[5], (c,), jnp.float32, 0.5, 1.5)
    eps = 1e-5

    out = jax.block_until_ready(
        depthwise_conv1d_bn_swish_btc(x_btc, w, gamma, beta, mean, var,
                                      padding=pad, eps=eps))

    conv = _ref_dwconv_bct(jnp.transpose(x_btc, (0, 2, 1)), w, pad)
    scale = gamma / jnp.sqrt(var + eps)
    shift = beta - mean * scale
    y = conv * scale[None, :, None] + shift[None, :, None]
    ref = jnp.transpose(y * (1.0 / (1.0 + jnp.exp(-y))), (0, 2, 1))
    assert out.shape == ref.shape, (out.shape, ref.shape)
    assert jnp.allclose(out, ref, atol=1e-4, rtol=1e-4), "fused_bn_swish"

    print("KERNEL_OK")
</pallas_src>

<mosaic_0001>
module attributes {stable_mosaic.version = 11 : i64} {
  func.func @_dwconv1d_kernel(%arg0: i32, %arg1: i32, %arg2: memref<1x48x16xf32, #tpu.memory_space<vmem>>, %arg3: memref<31x16xf32, #tpu.memory_space<vmem>>, %arg4: memref<1x16xf32, #tpu.memory_space<vmem>>, %arg5: memref<1x16xf32, #tpu.memory_space<vmem>>, %arg6: memref<1x48x16xf32, #tpu.memory_space<vmem>>, %arg7: memref<79x16xf32, #tpu.memory_space<vmem>>) attributes {dimension_semantics = [#tpu.dimension_semantics<parallel>, #tpu.dimension_semantics<parallel>], iteration_bounds = array<i64: 1, 2>, scalar_prefetch = 0 : i64, scratch_operands = 1 : i64, tpu.core_type = #tpu.core_type<tc>, window_params = [{transform_indices = @transform_0, window_bounds = array<i64: 1, 48, 16>}, {transform_indices = @transform_1, window_bounds = array<i64: 31, 16>}, {transform_indices = @transform_2, window_bounds = array<i64: 1, 16>}, {transform_indices = @transform_3, window_bounds = array<i64: 1, 16>}, {transform_indices = @transform_4, window_bounds = array<i64: 1, 48, 16>}]} {
    %cst = arith.constant 0.000000e+00 : f32
    %0 = vector.broadcast %cst : f32 to vector<15x16xf32>
    %c1 = arith.constant 1 : index
    %c0 = arith.constant 0 : index
    %1 = vector.load %arg7[%c1, %c0] : memref<79x16xf32, #tpu.memory_space<vmem>>, vector<15x16xf32>
    tpu.vector_store %arg7[%c1, %c0], %0 {strides = array<i32>} : memref<79x16xf32, #tpu.memory_space<vmem>>, vector<15x16xf32>,
    %c64 = arith.constant 64 : index
    %c0_0 = arith.constant 0 : index
    %2 = vector.load %arg7[%c64, %c0_0] : memref<79x16xf32, #tpu.memory_space<vmem>>, vector<15x16xf32>
    tpu.vector_store %arg7[%c64, %c0_0], %0 {strides = array<i32>} : memref<79x16xf32, #tpu.memory_space<vmem>>, vector<15x16xf32>,
    %c0_1 = arith.constant 0 : index
    %c0_2 = arith.constant 0 : index
    %c0_3 = arith.constant 0 : index
    %3 = vector.load %arg2[%c0_1, %c0_2, %c0_3] : memref<1x48x16xf32, #tpu.memory_space<vmem>>, vector<1x48x16xf32>
    %4 = vector.shape_cast %3 : vector<1x48x16xf32> to vector<48x16xf32>
    %c16 = arith.constant 16 : index
    %c0_4 = arith.constant 0 : index
    %5 = vector.load %arg7[%c16, %c0_4] : memref<79x16xf32, #tpu.memory_space<vmem>>, vector<48x16xf32>
    tpu.vector_store %arg7[%c16, %c0_4], %4 {strides = array<i32>} : memref<79x16xf32, #tpu.memory_space<vmem>>, vector<48x16xf32>,
    %c0_5 = arith.constant 0 : index
    %c0_6 = arith.constant 0 : index
    %6 = vector.load %arg3[%c0_5, %c0_6] : memref<31x16xf32, #tpu.memory_space<vmem>>, vector<31x16xf32>
    %c0_7 = arith.constant 0 : index
    %c0_8 = arith.constant 0 : index
    %7 = vector.load %arg4[%c0_7, %c0_8] : memref<1x16xf32, #tpu.memory_space<vmem>>, vector<1x16xf32>
    %c0_9 = arith.constant 0 : index
    %c0_10 = arith.constant 0 : index
    %8 = vector.load %arg5[%c0_9, %c0_10] : memref<1x16xf32, #tpu.memory_space<vmem>>, vector<1x16xf32>
    %9 = vector.extract_strided_slice %6 {offsets = [0, 0], sizes = [1, 16], strides = [1, 1]} : vector<31x16xf32> to vector<1x16xf32>
    %c1_11 = arith.constant 1 : index
    %c0_12 = arith.constant 0 : index
    %10 = vector.load %arg7[%c1_11, %c0_12] : memref<79x16xf32, #tpu.memory_space<vmem>>, vector<48x16xf32>
    %11 = vector.broadcast %9 : vector<1x16xf32> to vector<48x16xf32>
    %12 = arith.mulf %11, %10 : vector<48x16xf32>
    %13 = vector.extract_strided_slice %6 {offsets = [1, 0], sizes = [1, 16], strides = [1, 1]} : vector<31x16xf32> to vector<1x16xf32>
    %c2 = arith.constant 2 : index
    %c0_13 = arith.constant 0 : index
    %14 = vector.load %arg7[%c2, %c0_13] : memref<79x16xf32, #tpu.memory_space<vmem>>, vector<48x16xf32>
    %15 = vector.broadcast %13 : vector<1x16xf32> to vector<48x16xf32>
    %16 = arith.mulf %15, %14 : vector<48x16xf32>
    %17 = arith.addf %12, %16 : vector<48x16xf32>
    %18 = vector.extract_strided_slice %6 {offsets = [2, 0], sizes = [1, 16], strides = [1, 1]} : vector<31x16xf32> to vector<1x16xf32>
    %c3 = arith.constant 3 : index
    %c0_14 = arith.constant 0 : index
    %19 = vector.load %arg7[%c3, %c0_14] : memref<79x16xf32, #tpu.memory_space<vmem>>, vector<48x16xf32>
    %20 = vector.broadcast %18 : vector<1x16xf32> to vector<48x16xf32>
    %21 = arith.mulf %20, %19 : vector<48x16xf32>
    %22 = arith.addf %17, %21 : vector<48x16xf32>
    %23 = vector.extract_strided_slice %6 {offsets = [3, 0], sizes = [1, 16], strides = [1, 1]} : vector<31x16xf32> to vector<1x16xf32>
    %c4 = arith.constant 4 : index
    %c0_15 = arith.constant 0 : index
    %24 = vector.load %arg7[%c4, %c0_15] : memref<79x16xf32, #tpu.memory_space<vmem>>, vector<48x16xf32>
    %25 = vector.broadcast %23 : vector<1x16xf32> to vector<48x16xf32>
    %26 = arith.mulf %25, %24 : vector<48x16xf32>
    %27 = arith.addf %22, %26 : vector<48x16xf32>
    %28 = vector.extract_strided_slice %6 {offsets = [4, 0], sizes = [1, 16], strides = [1, 1]} : vector<31x16xf32> to vector<1x16xf32>
    %c5 = arith.constant 5 : index
    %c0_16 = arith.constant 0 : index
    %29 = vector.load %arg7[%c5, %c0_16] : memref<79x16xf32, #tpu.memory_space<vmem>>, vector<48x16xf32>
    %30 = vector.broadcast %28 : vector<1x16xf32> to vector<48x16xf32>
    %31 = arith.mulf %30, %29 : vector<48x16xf32>
    %32 = arith.addf %27, %31 : vector<48x16xf32>
    %33 = vector.extract_strided_slice %6 {offsets = [5, 0], sizes = [1, 16], strides = [1, 1]} : vector<31x16xf32> to vector<1x16xf32>
    %c6 = arith.constant 6 : index
    %c0_17 = arith.constant 0 : index
    %34 = vector.load %arg7[%c6, %c0_17] : memref<79x16xf32, #tpu.memory_space<vmem>>, vector<48x16xf32>
    %35 = vector.broadcast %33 : vector<1x16xf32> to vector<48x16xf32>
    %36 = arith.mulf %35, %34 : vector<48x16xf32>
    %37 = arith.addf %32, %36 : vector<48x16xf32>
    %38 = vector.extract_strided_slice %6 {offsets = [6, 0], sizes = [1, 16], strides = [1, 1]} : vector<31x16xf32> to vector<1x16xf32>
    %c7 = arith.constant 7 : index
    %c0_18 = arith.constant 0 : index
    %39 = vector.load %arg7[%c7, %c0_18] : memref<79x16xf32, #tpu.memory_space<vmem>>, vector<48x16xf32>
    %40 = vector.broadcast %38 : vector<1x16xf32> to vector<48x16xf32>
    %41 = arith.mulf %40, %39 : vector<48x16xf32>
    %42 = arith.addf %37, %41 : vector<48x16xf32>
    %43 = vector.extract_strided_slice %6 {offsets = [7, 0], sizes = [1, 16], strides = [1, 1]} : vector<31x16xf32> to vector<1x16xf32>
    %c8 = arith.constant 8 : index
    %c0_19 = arith.constant 0 : index
    %44 = vector.load %arg7[%c8, %c0_19] : memref<79x16xf32, #tpu.memory_space<vmem>>, vector<48x16xf32>
    %45 = vector.broadcast %43 : vector<1x16xf32> to vector<48x16xf32>
    %46 = arith.mulf %45, %44 : vector<48x16xf32>
    %47 = arith.addf %42, %46 : vector<48x16xf32>
    %48 = vector.extract_strided_slice %6 {offsets = [8, 0], sizes = [1, 16], strides = [1, 1]} : vector<31x16xf32> to vector<1x16xf32>
    %c9 = arith.constant 9 : index
    %c0_20 = arith.constant 0 : index
    %49 = vector.load %arg7[%c9, %c0_20] : memref<79x16xf32, #tpu.memory_space<vmem>>, vector<48x16xf32>
    %50 = vector.broadcast %48 : vector<1x16xf32> to vector<48x16xf32>
    %51 = arith.mulf %50, %49 : vector<48x16xf32>
    %52 = arith.addf %47, %51 : vector<48x16xf32>
    %53 = vector.extract_strided_slice %6 {offsets = [9, 0], sizes = [1, 16], strides = [1, 1]} : vector<31x16xf32> to vector<1x16xf32>
    %c10 = arith.constant 10 : index
    %c0_21 = arith.constant 0 : index
    %54 = vector.load %arg7[%c10, %c0_21] : memref<79x16xf32, #tpu.memory_space<vmem>>, vector<48x16xf32>
    %55 = vector.broadcast %53 : vector<1x16xf32> to vector<48x16xf32>
    %56 = arith.mulf %55, %54 : vector<48x16xf32>
    %57 = arith.addf %52, %56 : vector<48x16xf32>
    %58 = vector.extract_strided_slice %6 {offsets = [10, 0], sizes = [1, 16], strides = [1, 1]} : vector<31x16xf32> to vector<1x16xf32>
    %c11 = arith.constant 11 : index
    %c0_22 = arith.constant 0 : index
    %59 = vector.load %arg7[%c11, %c0_22] : memref<79x16xf32, #tpu.memory_space<vmem>>, vector<48x16xf32>
    %60 = vector.broadcast %58 : vector<1x16xf32> to vector<48x16xf32>
    %61 = arith.mulf %60, %59 : vector<48x16xf32>
    %62 = arith.addf %57, %61 : vector<48x16xf32>
    %63 = vector.extract_strided_slice %6 {offsets = [11, 0], sizes = [1, 16], strides = [1, 1]} : vector<31x16xf32> to vector<1x16xf32>
    %c12 = arith.constant 12 : index
    %c0_23 = arith.constant 0 : index
    %64 = vector.load %arg7[%c12, %c0_23] : memref<79x16xf32, #tpu.memory_space<vmem>>, vector<48x16xf32>
    %65 = vector.broadcast %63 : vector<1x16xf32> to vector<48x16xf32>
    %66 = arith.mulf %65, %64 : vector<48x16xf32>
    %67 = arith.addf %62, %66 : vector<48x16xf32>
    %68 = vector.extract_strided_slice %6 {offsets = [12, 0], sizes = [1, 16], strides = [1, 1]} : vector<31x16xf32> to vector<1x16xf32>
    %c13 = arith.constant 13 : index
    %c0_24 = arith.constant 0 : index
    %69 = vector.load %arg7[%c13, %c0_24] : memref<79x16xf32, #tpu.memory_space<vmem>>, vector<48x16xf32>
    %70 = vector.broadcast %68 : vector<1x16xf32> to vector<48x16xf32>
    %71 = arith.mulf %70, %69 : vector<48x16xf32>
    %72 = arith.addf %67, %71 : vector<48x16xf32>
    %73 = vector.extract_strided_slice %6 {offsets = [13, 0], sizes = [1, 16], strides = [1, 1]} : vector<31x16xf32> to vector<1x16xf32>
    %c14 = arith.constant 14 : index
    %c0_25 = arith.constant 0 : index
    %74 = vector.load %arg7[%c14, %c0_25] : memref<79x16xf32, #tpu.memory_space<vmem>>, vector<48x16xf32>
    %75 = vector.broadcast %73 : vector<1x16xf32> to vector<48x16xf32>
    %76 = arith.mulf %75, %74 : vector<48x16xf32>
    %77 = arith.addf %72, %76 : vector<48x16xf32>
    %78 = vector.extract_strided_slice %6 {offsets = [14, 0], sizes = [1, 16], strides = [1, 1]} : vector<31x16xf32> to vector<1x16xf32>
    %c15 = arith.constant 15 : index
    %c0_26 = arith.constant 0 : index
    %79 = vector.load %arg7[%c15, %c0_26] : memref<79x16xf32, #tpu.memory_space<vmem>>, vector<48x16xf32>
    %80 = vector.broadcast %78 : vector<1x16xf32> to vector<48x16xf32>
    %81 = arith.mulf %80, %79 : vector<48x16xf32>
    %82 = arith.addf %77, %81 : vector<48x16xf32>
    %83 = vector.extract_strided_slice %6 {offsets = [15, 0], sizes = [1, 16], strides = [1, 1]} : vector<31x16xf32> to vector<1x16xf32>
    %c16_27 = arith.constant 16 : index
    %c0_28 = arith.constant 0 : index
    %84 = vector.load %arg7[%c16_27, %c0_28] : memref<79x16xf32, #tpu.memory_space<vmem>>, vector<48x16xf32>
    %85 = vector.broadcast %83 : vector<1x16xf32> to vector<48x16xf32>
    %86 = arith.mulf %85, %84 : vector<48x16xf32>
    %87 = arith.addf %82, %86 : vector<48x16xf32>
    %88 = vector.extract_strided_slice %6 {offsets = [16, 0], sizes = [1, 16], strides = [1, 1]} : vector<31x16xf32> to vector<1x16xf32>
    %c17 = arith.constant 17 : index
    %c0_29 = arith.constant 0 : index
    %89 = vector.load %arg7[%c17, %c0_29] : memref<79x16xf32, #tpu.memory_space<vmem>>, vector<48x16xf32>
    %90 = vector.broadcast %88 : vector<1x16xf32> to vector<48x16xf32>
    %91 = arith.mulf %90, %89 : vector<48x16xf32>
    %92 = arith.addf %87, %91 : vector<48x16xf32>
    %93 = vector.extract_strided_slice %6 {offsets = [17, 0], sizes = [1, 16], strides = [1, 1]} : vector<31x16xf32> to vector<1x16xf32>
    %c18 = arith.constant 18 : index
    %c0_30 = arith.constant 0 : index
    %94 = vector.load %arg7[%c18, %c0_30] : memref<79x16xf32, #tpu.memory_space<vmem>>, vector<48x16xf32>
    %95 = vector.broadcast %93 : vector<1x16xf32> to vector<48x16xf32>
    %96 = arith.mulf %95, %94 : vector<48x16xf32>
    %97 = arith.addf %92, %96 : vector<48x16xf32>
    %98 = vector.extract_strided_slice %6 {offsets = [18, 0], sizes = [1, 16], strides = [1, 1]} : vector<31x16xf32> to vector<1x16xf32>
    %c19 = arith.constant 19 : index
    %c0_31 = arith.constant 0 : index
    %99 = vector.load %arg7[%c19, %c0_31] : memref<79x16xf32, #tpu.memory_space<vmem>>, vector<48x16xf32>
    %100 = vector.broadcast %98 : vector<1x16xf32> to vector<48x16xf32>
    %101 = arith.mulf %100, %99 : vector<48x16xf32>
    %102 = arith.addf %97, %101 : vector<48x16xf32>
    %103 = vector.extract_strided_slice %6 {offsets = [19, 0], sizes = [1, 16], strides = [1, 1]} : vector<31x16xf32> to vector<1x16xf32>
    %c20 = arith.constant 20 : index
    %c0_32 = arith.constant 0 : index
    %104 = vector.load %arg7[%c20, %c0_32] : memref<79x16xf32, #tpu.memory_space<vmem>>, vector<48x16xf32>
    %105 = vector.broadcast %103 : vector<1x16xf32> to vector<48x16xf32>
    %106 = arith.mulf %105, %104 : vector<48x16xf32>
    %107 = arith.addf %102, %106 : vector<48x16xf32>
    %108 = vector.extract_strided_slice %6 {offsets = [20, 0], sizes = [1, 16], strides = [1, 1]} : vector<31x16xf32> to vector<1x16xf32>
    %c21 = arith.constant 21 : index
    %c0_33 = arith.constant 0 : index
    %109 = vector.load %arg7[%c21, %c0_33] : memref<79x16xf32, #tpu.memory_space<vmem>>, vector<48x16xf32>
    %110 = vector.broadcast %108 : vector<1x16xf32> to vector<48x16xf32>
    %111 = arith.mulf %110, %109 : vector<48x16xf32>
    %112 = arith.addf %107, %111 : vector<48x16xf32>
    %113 = vector.extract_strided_slice %6 {offsets = [21, 0], sizes = [1, 16], strides = [1, 1]} : vector<31x16xf32> to vector<1x16xf32>
    %c22 = arith.constant 22 : index
    %c0_34 = arith.constant 0 : index
    %114 = vector.load %arg7[%c22, %c0_34] : memref<79x16xf32, #tpu.memory_space<vmem>>, vector<48x16xf32>
    %115 = vector.broadcast %113 : vector<1x16xf32> to vector<48x16xf32>
    %116 = arith.mulf %115, %114 : vector<48x16xf32>
    %117 = arith.addf %112, %116 : vector<48x16xf32>
    %118 = vector.extract_strided_slice %6 {offsets = [22, 0], sizes = [1, 16], strides = [1, 1]} : vector<31x16xf32> to vector<1x16xf32>
    %c23 = arith.constant 23 : index
    %c0_35 = arith.constant 0 : index
    %119 = vector.load %arg7[%c23, %c0_35] : memref<79x16xf32, #tpu.memory_space<vmem>>, vector<48x16xf32>
    %120 = vector.broadcast %118 : vector<1x16xf32> to vector<48x16xf32>
    %121 = arith.mulf %120, %119 : vector<48x16xf32>
    %122 = arith.addf %117, %121 : vector<48x16xf32>
    %123 = vector.extract_strided_slice %6 {offsets = [23, 0], sizes = [1, 16], strides = [1, 1]} : vector<31x16xf32> to vector<1x16xf32>
    %c24 = arith.constant 24 : index
    %c0_36 = arith.constant 0 : index
    %124 = vector.load %arg7[%c24, %c0_36] : memref<79x16xf32, #tpu.memory_space<vmem>>, vector<48x16xf32>
    %125 = vector.broadcast %123 : vector<1x16xf32> to vector<48x16xf32>
    %126 = arith.mulf %125, %124 : vector<48x16xf32>
    %127 = arith.addf %122, %126 : vector<48x16xf32>
    %128 = vector.extract_strided_slice %6 {offsets = [24, 0], sizes = [1, 16], strides = [1, 1]} : vector<31x16xf32> to vector<1x16xf32>
    %c25 = arith.constant 25 : index
    %c0_37 = arith.constant 0 : index
    %129 = vector.load %arg7[%c25, %c0_37] : memref<79x16xf32, #tpu.memory_space<vmem>>, vector<48x16xf32>
    %130 = vector.broadcast %128 : vector<1x16xf32> to vector<48x16xf32>
    %131 = arith.mulf %130, %129 : vector<48x16xf32>
    %132 = arith.addf %127, %131 : vector<48x16xf32>
    %133 = vector.extract_strided_slice %6 {offsets = [25, 0], sizes = [1, 16], strides = [1, 1]} : vector<31x16xf32> to vector<1x16xf32>
    %c26 = arith.constant 26 : index
    %c0_38 = arith.constant 0 : index
    %134 = vector.load %arg7[%c26, %c0_38] : memref<79x16xf32, #tpu.memory_space<vmem>>, vector<48x16xf32>
    %135 = vector.broadcast %133 : vector<1x16xf32> to vector<48x16xf32>
    %136 = arith.mulf %135, %134 : vector<48x16xf32>
    %137 = arith.addf %132, %136 : vector<48x16xf32>
    %138 = vector.extract_strided_slice %6 {offsets = [26, 0], sizes = [1, 16], strides = [1, 1]} : vector<31x16xf32> to vector<1x16xf32>
    %c27 = arith.constant 27 : index
    %c0_39 = arith.constant 0 : index
    %139 = vector.load %arg7[%c27, %c0_39] : memref<79x16xf32, #tpu.memory_space<vmem>>, vector<48x16xf32>
    %140 = vector.broadcast %138 : vector<1x16xf32> to vector<48x16xf32>
    %141 = arith.mulf %140, %139 : vector<48x16xf32>
    %142 = arith.addf %137, %141 : vector<48x16xf32>
    %143 = vector.extract_strided_slice %6 {offsets = [27, 0], sizes = [1, 16], strides = [1, 1]} : vector<31x16xf32> to vector<1x16xf32>
    %c28 = arith.constant 28 : index
    %c0_40 = arith.constant 0 : index
    %144 = vector.load %arg7[%c28, %c0_40] : memref<79x16xf32, #tpu.memory_space<vmem>>, vector<48x16xf32>
    %145 = vector.broadcast %143 : vector<1x16xf32> to vector<48x16xf32>
    %146 = arith.mulf %145, %144 : vector<48x16xf32>
    %147 = arith.addf %142, %146 : vector<48x16xf32>
    %148 = vector.extract_strided_slice %6 {offsets = [28, 0], sizes = [1, 16], strides = [1, 1]} : vector<31x16xf32> to vector<1x16xf32>
    %c29 = arith.constant 29 : index
    %c0_41 = arith.constant 0 : index
    %149 = vector.load %arg7[%c29, %c0_41] : memref<79x16xf32, #tpu.memory_space<vmem>>, vector<48x16xf32>
    %150 = vector.broadcast %148 : vector<1x16xf32> to vector<48x16xf32>
    %151 = arith.mulf %150, %149 : vector<48x16xf32>
    %152 = arith.addf %147, %151 : vector<48x16xf32>
    %153 = vector.extract_strided_slice %6 {offsets = [29, 0], sizes = [1, 16], strides = [1, 1]} : vector<31x16xf32> to vector<1x16xf32>
    %c30 = arith.constant 30 : index
    %c0_42 = arith.constant 0 : index
    %154 = vector.load %arg7[%c30, %c0_42] : memref<79x16xf32, #tpu.memory_space<vmem>>, vector<48x16xf32>
    %155 = vector.broadcast %153 : vector<1x16xf32> to vector<48x16xf32>
    %156 = arith.mulf %155, %154 : vector<48x16xf32>
    %157 = arith.addf %152, %156 : vector<48x16xf32>
    %158 = vector.extract_strided_slice %6 {offsets = [30, 0], sizes = [1, 16], strides = [1, 1]} : vector<31x16xf32> to vector<1x16xf32>
    %c31 = arith.constant 31 : index
    %c0_43 = arith.constant 0 : index
    %159 = vector.load %arg7[%c31, %c0_43] : memref<79x16xf32, #tpu.memory_space<vmem>>, vector<48x16xf32>
    %160 = vector.broadcast %158 : vector<1x16xf32> to vector<48x16xf32>
    %161 = arith.mulf %160, %159 : vector<48x16xf32>
    %162 = arith.addf %157, %161 : vector<48x16xf32>
    %163 = vector.broadcast %7 : vector<1x16xf32> to vector<48x16xf32>
    %164 = arith.mulf %162, %163 : vector<48x16xf32>
    %165 = vector.broadcast %8 : vector<1x16xf32> to vector<48x16xf32>
    %166 = arith.addf %164, %165 : vector<48x16xf32>
    %c0_44 = arith.constant 0 : index
    %c0_45 = arith.constant 0 : index
    %c0_46 = arith.constant 0 : index
    %167 = vector.load %arg6[%c0_44, %c0_45, %c0_46] : memref<1x48x16xf32, #tpu.memory_space<vmem>>, vector<1x48x16xf32>
    %168 = vector.shape_cast %167 : vector<1x48x16xf32> to vector<48x16xf32>
    %169 = vector.shape_cast %166 : vector<48x16xf32> to vector<1x48x16xf32>
    tpu.vector_store %arg6[%c0_44, %c0_45, %c0_46], %169 {strides = array<i32>} : memref<1x48x16xf32, #tpu.memory_space<vmem>>, vector<1x48x16xf32>,
    return
  }
  func.func @transform_0(%arg0: i32, %arg1: i32) -> (i32, i32, i32) {
    %c0_i32 = arith.constant 0 : i32
    %c0_i32_0 = arith.constant 0 : i32
    return %arg1, %c0_i32, %arg0 : i32, i32, i32
  }
  func.func @transform_1(%arg0: i32, %arg1: i32) -> (i32, i32) {
    %c0_i32 = arith.constant 0 : i32
    %c0_i32_0 = arith.constant 0 : i32
    return %c0_i32, %arg0 : i32, i32
  }
  func.func @transform_2(%arg0: i32, %arg1: i32) -> (i32, i32) {
    %c0_i32 = arith.constant 0 : i32
    %c0_i32_0 = arith.constant 0 : i32
    return %c0_i32, %arg0 : i32, i32
  }
  func.func @transform_3(%arg0: i32, %arg1: i32) -> (i32, i32) {
    %c0_i32 = arith.constant 0 : i32
    %c0_i32_0 = arith.constant 0 : i32
    return %c0_i32, %arg0 : i32, i32
  }
  func.func @transform_4(%arg0: i32, %arg1: i32) -> (i32, i32, i32) {
    %c0_i32 = arith.constant 0 : i32
    %c0_i32_0 = arith.constant 0 : i32
    return %arg1, %c0_i32, %arg0 : i32, i32, i32
  }
}

</mosaic_0001>

<llo_original>
// kernel: tpu_custom_call.1
$region0: #{tpu_custom_call.1}
  #allocation0 [shape = 'u32[]', space=smem, size = 0x4, offset = 0x4, fixed_abs, tag = 'smem constant byte address 0x4 - core index']
  #allocation1 [shape = 'u32[72,128]{1,0:T(1,128)}', space=vmem, size = 0x9000, scoped, tag = 'internal scratch']
  #allocation2 [shape = 'f32[79,16]{1,0:T(8,128)}', space=vmem, size = 0xa000, scoped, tag = 'scratch operand']
  %s0 = inlined_call_operand.vmem [shape: f32[2,48,16], index: 0, kind: input, shape index: {}]
  %s1 = inlined_call_operand.vmem [shape: f32[31,16], index: 1, kind: input, shape index: {}]
  %s2 = inlined_call_operand.vmem [shape: f32[1,16], index: 2, kind: input, shape index: {}]
  %s3 = inlined_call_operand.vmem [shape: f32[1,16], index: 3, kind: input, shape index: {}]
  %s4 = inlined_call_operand.vmem [shape: f32[2,48,16], index: 4, kind: output, shape index: {}]
  %s5 = sld [smem:[#allocation0]]
  $region49: #{tpu_custom_call.1} parent=0
    _
  %s7 = ssub.s32 1, %s5
  %s8 = scalar_select 0, %s7, %s5
  loop: start=0, step=1, limit=4
  $region2: #{tpu_custom_call.1} parent=0 // loop_pre_header
    _
  $region3: #{tpu_custom_call.1} parent=0 // loop_header
    %s10 = sphi 0, %s14
    %p11 = scmp.ge.s32.totalorder %s10, 4
    %s17 = sphi 0, %s29
    %s18 = sphi 0, %s25
    %s19 = sphi 0, %s17
    %s20 = sphi 0, %s18
    %s21 = sphi 0, %s19
    %s22 = sphi 0, %s20
    %s34 = sphi 0, %s36
    %s37 = sphi 0, %s34
    %s38 = sphi 0, %s37
    %s54 = sphi 0, %s38
    %s60 = sphi 0, %s62
    %s63 = sphi 0, %s60
    %s64 = sphi 0, %s63
    %s80 = sphi 0, %s64
    %s86 = sphi 0, %s88
    %s89 = sphi 0, %s86
    %s90 = sphi 0, %s89
    %s106 = sphi 0, %s90
    %s112 = sphi 0, %s114
    %s115 = sphi 0, %s112
    %s116 = sphi 0, %s115
    %s132 = sphi 0, %s116
    %s140 = sphi 0, %s142
    %s143 = sphi 0, %s140
    %s144 = sphi 0, %s143
    %s160 = sphi 0, %s144
  $region4: #{tpu_custom_call.1} parent=0 // loop_header_branch
    %13 = sbr.rel (%p11) target = $region8
  $region5: #{tpu_custom_call.1} parent=0 // loop_body
    %s15 = ssub.s32 %s10, 1
    %s16 = ssub.s32 %s10, 2
    %s23 = sadd.s32 1, %s18
    %p24 = scmp.ge.s32.totalorder %s23, 2
    %s25 = scalar_select %p24, 0, %s23
    %s26 = sadd.s32 1, %s17
    %s27 = scalar_select %p24, %s26, %s17
    %p28 = scmp.ge.s32.totalorder %s27, 1
    %s29 = scalar_select %p28, 0, %s27
    %s30 = ssub.s32 %s18, %s25
    %s31 = ssub.s32 %s17, %s29
    %s32 = sor.u32 %s30, %s31
    %p33 = scmp.eq.s32.totalorder %s32, 0
    %s35 = sadd.s32 %s34, 1
    %s36 = scalar_select %p33, %s34, %s35
    %p39 = pneg %p33
    %p40 = scmp.eq.s32.totalorder %s10, 1
    %p41 = por %p39, %p40
    %p42 = scmp.ne.s32.totalorder %s34, %s37
    %p43 = scmp.eq.s32.totalorder %s10, 0
    %p44 = por %p42, %p43
    %p45 = scmp.ne.s32.totalorder %s34, %s37
    %p46 = scmp.eq.s32.totalorder %s15, 1
    %p47 = por %p45, %p46
    %p48 = scmp.ne.s32.totalorder %s37, %s38
    %p49 = scmp.eq.s32.totalorder %s15, 0
    %p50 = por %p48, %p49
    %p51 = scmp.ne.s32.totalorder %s37, %s38
    %p52 = scmp.eq.s32.totalorder %s16, 1
    %p53 = por %p51, %p52
    %p55 = scmp.ne.s32.totalorder %s38, %s54
    %p56 = scmp.eq.s32.totalorder %s16, 0
    %p57 = por %p55, %p56
    %s58 = ssub.s32 %s17, %s29
    %p59 = scmp.eq.s32.totalorder %s58, 0
    %s61 = sadd.s32 %s60, 1
    %s62 = scalar_select %p59, %s60, %s61
    %p65 = pneg %p59
    %p66 = scmp.eq.s32.totalorder %s10, 1
    %p67 = por %p65, %p66
    %p68 = scmp.ne.s32.totalorder %s60, %s63
    %p69 = scmp.eq.s32.totalorder %s10, 0
    %p70 = por %p68, %p69
    %p71 = scmp.ne.s32.totalorder %s60, %s63
    %p72 = scmp.eq.s32.totalorder %s15, 1
    %p73 = por %p71, %p72
    %p74 = scmp.ne.s32.totalorder %s63, %s64
    %p75 = scmp.eq.s32.totalorder %s15, 0
    %p76 = por %p74, %p75
    %p77 = scmp.ne.s32.totalorder %s63, %s64
    %p78 = scmp.eq.s32.totalorder %s16, 1
    %p79 = por %p77, %p78
    %p81 = scmp.ne.s32.totalorder %s64, %s80
    %p82 = scmp.eq.s32.totalorder %s16, 0
    %p83 = por %p81, %p82
    %s84 = ssub.s32 %s17, %s29
    %p85 = scmp.eq.s32.totalorder %s84, 0
    %s87 = sadd.s32 %s86, 1
    %s88 = scalar_select %p85, %s86, %s87
    %p91 = pneg %p85
    %p92 = scmp.eq.s32.totalorder %s10, 1
    %p93 = por %p91, %p92
    %p94 = scmp.ne.s32.totalorder %s86, %s89
    %p95 = scmp.eq.s32.totalorder %s10, 0
    %p96 = por %p94, %p95
    %p97 = scmp.ne.s32.totalorder %s86, %s89
    %p98 = scmp.eq.s32.totalorder %s15, 1
    %p99 = por %p97, %p98
    %p100 = scmp.ne.s32.totalorder %s89, %s90
    %p101 = scmp.eq.s32.totalorder %s15, 0
    %p102 = por %p100, %p101
    %p103 = scmp.ne.s32.totalorder %s89, %s90
    %p104 = scmp.eq.s32.totalorder %s16, 1
    %p105 = por %p103, %p104
    %p107 = scmp.ne.s32.totalorder %s90, %s106
    %p108 = scmp.eq.s32.totalorder %s16, 0
    %p109 = por %p107, %p108
    %s110 = ssub.s32 %s17, %s29
    %p111 = scmp.eq.s32.totalorder %s110, 0
    %s113 = sadd.s32 %s112, 1
    %s114 = scalar_select %p111, %s112, %s113
    %p117 = pneg %p111
    %p118 = scmp.eq.s32.totalorder %s10, 1
    %p119 = por %p117, %p118
    %p120 = scmp.ne.s32.totalorder %s112, %s115
    %p121 = scmp.eq.s32.totalorder %s10, 0
    %p122 = por %p120, %p121
    %p123 = scmp.ne.s32.totalorder %s112, %s115
    %p124 = scmp.eq.s32.totalorder %s15, 1
    %p125 = por %p123, %p124
    %p126 = scmp.ne.s32.totalorder %s115, %s116
    %p127 = scmp.eq.s32.totalorder %s15, 0
    %p128 = por %p126, %p127
    %p129 = scmp.ne.s32.totalorder %s115, %s116
    %p130 = scmp.eq.s32.totalorder %s16, 1
    %p131 = por %p129, %p130
    %p133 = scmp.ne.s32.totalorder %s116, %s132
    %p134 = scmp.eq.s32.totalorder %s16, 0
    %p135 = por %p133, %p134
    %s136 = ssub.s32 %s18, %s25
    %s137 = ssub.s32 %s17, %s29
    %s138 = sor.u32 %s136, %s137
    %p139 = scmp.eq.s32.totalorder %s138, 0
    %s141 = sadd.s32 %s140, 1
    %s142 = scalar_select %p139, %s140, %s141
    %p145 = pneg %p139
    %p146 = scmp.eq.s32.totalorder %s10, 1
    %p147 = por %p145, %p146
    %p148 = scmp.ne.s32.totalorder %s140, %s143
    %p149 = scmp.eq.s32.totalorder %s10, 0
    %p150 = por %p148, %p149
    %p151 = scmp.ne.s32.totalorder %s140, %s143
    %p152 = scmp.eq.s32.totalorder %s15, 1
    %p153 = por %p151, %p152
    %p154 = scmp.ne.s32.totalorder %s143, %s144
    %p155 = scmp.eq.s32.totalorder %s15, 0
    %p156 = por %p154, %p155
    %p157 = scmp.ne.s32.totalorder %s143, %s144
    %p158 = scmp.eq.s32.totalorder %s16, 1
    %p159 = por %p157, %p158
    %p161 = scmp.ne.s32.totalorder %s144, %s160
    %p162 = scmp.eq.s32.totalorder %s16, 0
    %p163 = por %p161, %p162
    %p164 = scmp.le.s32.totalorder 1, %s10
    %p165 = scmp.lt.s32.totalorder %s10, 3
    %p166 = pnand %p164, %p165
    %p167 = pneg %p166
    // Predicated region
    $region9: #{tpu_custom_call.1} parent=5 // pred_check
      _
    $region10: #{tpu_custom_call.1} parent=5 // pred_check_branch
      %169 = sbr.rel (%p166) target = $region12
    $region11: #{tpu_custom_call.1} parent=5 // pred_region
      %s170 = ssub.s32 %s10, 1
      // Predicated region
      $region13: #{tpu_custom_call.1} parent=11 // pred_check
        %p171 = pneg %p76
      $region14: #{tpu_custom_call.1} parent=11 // pred_check_branch
        %173 = sbr.rel (%p171) target = $region16
      $region15: #{tpu_custom_call.1} parent=11 // pred_region
        %p174 = scmp.lt.s32.totalorder %s19, 0
        %s175 = scalar_select %p174, %s19, 0
        %s176 = smul.addr %s175, 8
        %s177 = scalar_lea.vmem %s1, %s176
      $region16: #{tpu_custom_call.1} parent=11 // pred_fallthru
        _
      // Predicated region
      $region17: #{tpu_custom_call.1} parent=11 // pred_check
        %p178 = pneg %p102
      $region18: #{tpu_custom_call.1} parent=11 // pred_check_branch
        %180 = sbr.rel (%p178) target = $region20
      $region19: #{tpu_custom_call.1} parent=11 // pred_region
        %p181 = scmp.lt.s32.totalorder %s19, 0
        %s182 = scalar_select %p181, %s19, 0
        %s183 = scalar_lea.vmem %s2, %s182
      $region20: #{tpu_custom_call.1} parent=11 // pred_fallthru
        _
      // Predicated region
      $region21: #{tpu_custom_call.1} parent=11 // pred_check
        %p184 = pneg %p128
      $region22: #{tpu_custom_call.1} parent=11 // pred_check_branch
        %186 = sbr.rel (%p184) target = $region24
      $region23: #{tpu_custom_call.1} parent=11 // pred_region
        %p187 = scmp.lt.s32.totalorder %s19, 0
        %s188 = scalar_select %p187, %s19, 0
        %s189 = scalar_lea.vmem %s3, %s188
      $region24: #{tpu_custom_call.1} parent=11 // pred_fallthru
        _
    $region12: #{tpu_custom_call.1} parent=5 // pred_fallthru
      _
    %p190 = scmp.lt.s32.totalorder %s10, 2
    // Predicated region
    $region25: #{tpu_custom_call.1} parent=5 // pred_check
      %p191 = pneg %p190
    $region26: #{tpu_custom_call.1} parent=5 // pred_check_branch
      %193 = sbr.rel (%p191) target = $region28
    $region27: #{tpu_custom_call.1} parent=5 // pred_region
      // Predicated region
      $region29: #{tpu_custom_call.1} parent=27 // pred_check
        %p194 = pneg %p44
      $region30: #{tpu_custom_call.1} parent=27 // pred_check_branch
        %196 = sbr.rel (%p194) target = $region32
      $region31: #{tpu_custom_call.1} parent=27 // pred_region
        %p197 = scmp.lt.s32.totalorder %s18, 1
        %s198 = scalar_select %p197, %s18, 1
        %p199 = scmp.lt.s32.totalorder %s17, 0
        %s200 = scalar_select %p199, %s17, 0
        %s201 = smul.addr %s198, 6
        %s202 = sadd.s32 %s200, %s201
        %s203 = smul.addr %s202, 8
        %s204 = scalar_lea.vmem %s0, %s203
      $region32: #{tpu_custom_call.1} parent=27 // pred_fallthru
        _
    $region28: #{tpu_custom_call.1} parent=5 // pred_fallthru
      _
    %p205 = scmp.le.s32.totalorder 1, %s10
    %p206 = scmp.lt.s32.totalorder %s10, 3
    %p207 = pnand %p205, %p206
    %p208 = pneg %p207
    // Predicated region
    $region33: #{tpu_custom_call.1} parent=5 // pred_check
      _
    $region34: #{tpu_custom_call.1} parent=5 // pred_check_branch
      %210 = sbr.rel (%p207) target = $region36
    $region35: #{tpu_custom_call.1} parent=5 // pred_region
      %s211 = ssub.s32 %s10, 1
      %p212 = scmp.lt.s32.totalorder %s20, 1
      %s213 = scalar_select %p212, %s20, 1
      %p214 = scmp.lt.s32.totalorder %s19, 0
      %s215 = scalar_select %p214, %s19, 0
      %s216 = smul.addr %s213, 6
      %s217 = sadd.s32 %s215, %s216
      %s218 = smul.addr %s217, 8
      %s219 = scalar_lea.vmem %s0, %s218
      %p220 = pneg %p50
      %p221 = pneg %p47
      %p222 = scmp.lt.s32.totalorder %s19, 0
      %s223 = scalar_select %p222, %s19, 0
      %s224 = smul.addr %s223, 8
      %s225 = scalar_lea.vmem %s1, %s224
      %p226 = pneg %p76
      %p227 = pneg %p73
      %p228 = scmp.lt.s32.totalorder %s19, 0
      %s229 = scalar_select %p228, %s19, 0
      %s230 = scalar_lea.vmem %s2, %s229
      %p231 = pneg %p102
      %p232 = pneg %p99
      %p233 = scmp.lt.s32.totalorder %s19, 0
      %s234 = scalar_select %p233, %s19, 0
      %s235 = scalar_lea.vmem %s3, %s234
      %p236 = pneg %p128
      %p237 = pneg %p125
      %p238 = pneg %p156
      %p239 = pneg %p153
      %p240 = scmp.lt.s32.totalorder %s20, 1
      %s241 = scalar_select %p240, %s20, 1
      %p242 = scmp.lt.s32.totalorder %s19, 0
      %s243 = scalar_select %p242, %s19, 0
      %s244 = smul.addr %s241, 6
      %s245 = sadd.s32 %s243, %s244
      %s246 = smul.addr %s245, 8
      %s247 = scalar_lea.vmem %s4, %s246
      %p248 = scmp.lt.s32.totalorder %s20, 1
      %s249 = scalar_select %p248, %s20, 1
      %p250 = scmp.lt.s32.totalorder %s19, 0
      %s251 = scalar_select %p250, %s19, 0
      %s252 = smul.addr %s249, 6
      %s253 = sadd.s32 %s251, %s252
      %s254 = smul.addr %s253, 8
      %s255 = scalar_lea.vmem %s0, %s254
      %p256 = scmp.lt.s32.totalorder %s19, 0
      %s257 = scalar_select %p256, %s19, 0
      %s258 = smul.addr %s257, 8
      %s259 = scalar_lea.vmem %s1, %s258
      %p260 = scmp.lt.s32.totalorder %s19, 0
      %s261 = scalar_select %p260, %s19, 0
      %s262 = scalar_lea.vmem %s2, %s261
      %p263 = scmp.lt.s32.totalorder %s19, 0
      %s264 = scalar_select %p263, %s19, 0
      %s265 = scalar_lea.vmem %s3, %s264
      %p266 = scmp.lt.s32.totalorder %s20, 1
      %s267 = scalar_select %p266, %s20, 1
      %p268 = scmp.lt.s32.totalorder %s19, 0
      %s269 = scalar_select %p268, %s19, 0
      %s270 = smul.addr %s267, 6
      %s271 = sadd.s32 %s269, %s270
      %s272 = smul.addr %s271, 8
      %s273 = scalar_lea.vmem %s4, %s272
      %vm274 = vcmask 130048
      %275 = vst.msk [vmem:[#allocation2 + $0x1] sm:$0xff] %vm274, 0.0
      %vm276 = vcmask 129024
      %277 = vst.msk [vmem:[#allocation2 + $0x9] sm:$0x7f] %vm276, 0.0
      %278 = vst.msk [vmem:[#allocation2 + $0x40] sm:$0xff] %vm274, 0.0
      %279 = vst.msk [vmem:[#allocation2 + $0x48] sm:$0x7f] %vm276, 0.0
      %v280 = vld [vmem:[%s255] sm:$0xff]
      %v281 = vld [vmem:[%s255 + $0x8] sm:$0xff]
      %v282 = vld [vmem:[%s255 + $0x10] sm:$0xff]
      %v283 = vld [vmem:[%s255 + $0x18] sm:$0xff]
      %v284 = vld [vmem:[%s255 + $0x20] sm:$0xff]
      %v285 = vld [vmem:[%s255 + $0x28] sm:$0xff]
      %286 = vst.msk [vmem:[#allocation2 + $0x10] sm:$0xff] %vm274, %v280
      %287 = vst.msk [vmem:[#allocation2 + $0x18] sm:$0xff] %vm274, %v281
      %288 = vst.msk [vmem:[#allocation2 + $0x20] sm:$0xff] %vm274, %v282
      %289 = vst.msk [vmem:[#allocation2 + $0x28] sm:$0xff] %vm274, %v283
      %290 = vst.msk [vmem:[#allocation2 + $0x30] sm:$0xff] %vm274, %v284
      %291 = vst.msk [vmem:[#allocation2 + $0x38] sm:$0xff] %vm274, %v285
      %v292 = vld [vmem:[%s259] sm:$0xff]
      %v293 = vld [vmem:[%s259 + $0x8] sm:$0xff]
      %v294 = vld [vmem:[%s259 + $0x10] sm:$0xff]
      %v295 = vld [vmem:[%s259 + $0x18] sm:$0x7f]
      %v296 = vld [vmem:[%s262] sm:$0x1]
      %v297 = vld [vmem:[%s265] sm:$0x1]
      %v298 = vld [vmem:[#allocation2 + $0x1] sm:$0xff]
      %v299 = vld [vmem:[#allocation2 + $0x9] sm:$0xff]
      %v300 = vld [vmem:[#allocation2 + $0x11] sm:$0xff]
      %v301 = vld [vmem:[#allocation2 + $0x19] sm:$0xff]
      %v302 = vld [vmem:[#allocation2 + $0x21] sm:$0xff]
      %v303 = vld [vmem:[#allocation2 + $0x29] sm:$0xff]
      %v304 = vperm.slane %v292, 0
      %v305 = vmul.f32 %v304, %v298
      %v306 = vmul.f32 %v304, %v299
      %v307 = vmul.f32 %v304, %v300
      %v308 = vmul.f32 %v304, %v301
      %v309 = vmul.f32 %v304, %v302
      %v310 = vmul.f32 %v304, %v303
      %v311 = vld [vmem:[#allocation2 + $0x2] sm:$0xff]
      %v312 = vld [vmem:[#allocation2 + $0xa] sm:$0xff]
      %v313 = vld [vmem:[#allocation2 + $0x12] sm:$0xff]
      %v314 = vld [vmem:[#allocation2 + $0x1a] sm:$0xff]
      %v315 = vld [vmem:[#allocation2 + $0x22] sm:$0xff]
      %v316 = vld [vmem:[#allocation2 + $0x2a] sm:$0xff]
      %v317 = vperm.slane %v292, 1
      %v318 = vmul.f32 %v317, %v311
      %v319 = vmul.f32 %v317, %v312
      %v320 = vmul.f32 %v317, %v313
      %v321 = vmul.f32 %v317, %v314
      %v322 = vmul.f32 %v317, %v315
      %v323 = vmul.f32 %v317, %v316
      %v324 = vadd.f32 %v305, %v318
      %v325 = vadd.f32 %v306, %v319
      %v326 = vadd.f32 %v307, %v320
      %v327 = vadd.f32 %v308, %v321
      %v328 = vadd.f32 %v309, %v322
      %v329 = vadd.f32 %v310, %v323
      %v330 = vld [vmem:[#allocation2 + $0x3] sm:$0xff]
      %v331 = vld [vmem:[#allocation2 + $0xb] sm:$0xff]
      %v332 = vld [vmem:[#allocation2 + $0x13] sm:$0xff]
      %v333 = vld [vmem:[#allocation2 + $0x1b] sm:$0xff]
      %v334 = vld [vmem:[#allocation2 + $0x23] sm:$0xff]
      %v335 = vld [vmem:[#allocation2 + $0x2b] sm:$0xff]
      %v336 = vperm.slane %v292, 2
      %v337 = vmul.f32 %v336, %v330
      %v338 = vmul.f32 %v336, %v331
      %v339 = vmul.f32 %v336, %v332
      %v340 = vmul.f32 %v336, %v333
      %v341 = vmul.f32 %v336, %v334
      %v342 = vmul.f32 %v336, %v335
      %v343 = vadd.f32 %v324, %v337
      %v344 = vadd.f32 %v325, %v338
      %v345 = vadd.f32 %v326, %v339
      %v346 = vadd.f32 %v327, %v340
      %v347 = vadd.f32 %v328, %v341
      %v348 = vadd.f32 %v329, %v342
      %v349 = vld [vmem:[#allocation2 + $0x4] sm:$0xff]
      %v350 = vld [vmem:[#allocation2 + $0xc] sm:$0xff]
      %v351 = vld [vmem:[#allocation2 + $0x14] sm:$0xff]
      %v352 = vld [vmem:[#allocation2 + $0x1c] sm:$0xff]
      %v353 = vld [vmem:[#allocation2 + $0x24] sm:$0xff]
      %v354 = vld [vmem:[#allocation2 + $0x2c] sm:$0xff]
      %v355 = vperm.slane %v292, 3
      %v356 = vmul.f32 %v355, %v349
      %v357 = vmul.f32 %v355, %v350
      %v358 = vmul.f32 %v355, %v351
      %v359 = vmul.f32 %v355, %v352
      %v360 = vmul.f32 %v355, %v353
      %v361 = vmul.f32 %v355, %v354
      %v362 = vadd.f32 %v343, %v356
      %v363 = vadd.f32 %v344, %v357
      %v364 = vadd.f32 %v345, %v358
      %v365 = vadd.f32 %v346, %v359
      %v366 = vadd.f32 %v347, %v360
      %v367 = vadd.f32 %v348, %v361
      %v368 = vld [vmem:[#allocation2 + $0x5] sm:$0xff]
      %v369 = vld [vmem:[#allocation2 + $0xd] sm:$0xff]
      %v370 = vld [vmem:[#allocation2 + $0x15] sm:$0xff]
      %v371 = vld [vmem:[#allocation2 + $0x1d] sm:$0xff]
      %v372 = vld [vmem:[#allocation2 + $0x25] sm:$0xff]
      %v373 = vld [vmem:[#allocation2 + $0x2d] sm:$0xff]
      %v374 = vperm.slane %v292, 4
      %v375 = vmul.f32 %v374, %v368
      %v376 = vmul.f32 %v374, %v369
      %v377 = vmul.f32 %v374, %v370
      %v378 = vmul.f32 %v374, %v371
      %v379 = vmul.f32 %v374, %v372
      %v380 = vmul.f32 %v374, %v373
      %v381 = vadd.f32 %v362, %v375
      %v382 = vadd.f32 %v363, %v376
      %v383 = vadd.f32 %v364, %v377
      %v384 = vadd.f32 %v365, %v378
      %v385 = vadd.f32 %v366, %v379
      %v386 = vadd.f32 %v367, %v380
      %v387 = vld [vmem:[#allocation2 + $0x6] sm:$0xff]
      %v388 = vld [vmem:[#allocation2 + $0xe] sm:$0xff]
      %v389 = vld [vmem:[#allocation2 + $0x16] sm:$0xff]
      %v390 = vld [vmem:[#allocation2 + $0x1e] sm:$0xff]
      %v391 = vld [vmem:[#allocation2 + $0x26] sm:$0xff]
      %v392 = vld [vmem:[#allocation2 + $0x2e] sm:$0xff]
      %v393 = vperm.slane %v292, 5
      %v394 = vmul.f32 %v393, %v387
      %v395 = vmul.f32 %v393, %v388
      %v396 = vmul.f32 %v393, %v389
      %v397 = vmul.f32 %v393, %v390
      %v398 = vmul.f32 %v393, %v391
      %v399 = vmul.f32 %v393, %v392
      %v400 = vadd.f32 %v381, %v394
      %v401 = vadd.f32 %v382, %v395
      %v402 = vadd.f32 %v383, %v396
      %v403 = vadd.f32 %v384, %v397
      %v404 = vadd.f32 %v385, %v398
      %v405 = vadd.f32 %v386, %v399
      %v406 = vld [vmem:[#allocation2 + $0x7] sm:$0xff]
      %v407 = vld [vmem:[#allocation2 + $0xf] sm:$0xff]
      %v408 = vld [vmem:[#allocation2 + $0x17] sm:$0xff]
      %v409 = vld [vmem:[#allocation2 + $0x1f] sm:$0xff]
      %v410 = vld [vmem:[#allocation2 + $0x27] sm:$0xff]
      %v411 = vld [vmem:[#allocation2 + $0x2f] sm:$0xff]
      %v412 = vperm.slane %v292, 6
      %v413 = vmul.f32 %v412, %v406
      %v414 = vmul.f32 %v412, %v407
      %v415 = vmul.f32 %v412, %v408
      %v416 = vmul.f32 %v412, %v409
      %v417 = vmul.f32 %v412, %v410
      %v418 = vmul.f32 %v412, %v411
      %v419 = vadd.f32 %v400, %v413
      %v420 = vadd.f32 %v401, %v414
      %v421 = vadd.f32 %v402, %v415
      %v422 = vadd.f32 %v403, %v416
      %v423 = vadd.f32 %v404, %v417
      %v424 = vadd.f32 %v405, %v418
      %v425 = vld [vmem:[#allocation2 + $0x8] sm:$0xff]
      %v426 = vld [vmem:[#allocation2 + $0x10] sm:$0xff]
      %v427 = vld [vmem:[#allocation2 + $0x18] sm:$0xff]
      %v428 = vld [vmem:[#allocation2 + $0x20] sm:$0xff]
      %v429 = vld [vmem:[#allocation2 + $0x28] sm:$0xff]
      %v430 = vld [vmem:[#allocation2 + $0x30] sm:$0xff]
      %v431 = vperm.slane %v292, 7
      %v432 = vmul.f32 %v431, %v425
      %v433 = vmul.f32 %v431, %v426
      %v434 = vmul.f32 %v431, %v427
      %v435 = vmul.f32 %v431, %v428
      %v436 = vmul.f32 %v431, %v429
      %v437 = vmul.f32 %v431, %v430
      %v438 = vadd.f32 %v419, %v432
      %v439 = vadd.f32 %v420, %v433
      %v440 = vadd.f32 %v421, %v434
      %v441 = vadd.f32 %v422, %v435
      %v442 = vadd.f32 %v423, %v436
      %v443 = vadd.f32 %v424, %v437
      %v444 = vld [vmem:[#allocation2 + $0x31] sm:$0xff]
      %v445 = vperm.slane %v293, 0
      %v446 = vmul.f32 %v445, %v299
      %v447 = vmul.f32 %v445, %v300
      %v448 = vmul.f32 %v445, %v301
      %v449 = vmul.f32 %v445, %v302
      %v450 = vmul.f32 %v445, %v303
      %v451 = vmul.f32 %v445, %v444
      %v452 = vadd.f32 %v438, %v446
      %v453 = vadd.f32 %v439, %v447
      %v454 = vadd.f32 %v440, %v448
      %v455 = vadd.f32 %v441, %v449
      %v456 = vadd.f32 %v442, %v450
      %v457 = vadd.f32 %v443, %v451
      %v458 = vld [vmem:[#allocation2 + $0x32] sm:$0xff]
      %v459 = vperm.slane %v293, 1
      %v460 = vmul.f32 %v459, %v312
      %v461 = vmul.f32 %v459, %v313
      %v462 = vmul.f32 %v459, %v314
      %v463 = vmul.f32 %v459, %v315
      %v464 = vmul.f32 %v459, %v316
      %v465 = vmul.f32 %v459, %v458
      %v466 = vadd.f32 %v452, %v460
      %v467 = vadd.f32 %v453, %v461
      %v468 = vadd.f32 %v454, %v462
      %v469 = vadd.f32 %v455, %v463
      %v470 = vadd.f32 %v456, %v464
      %v471 = vadd.f32 %v457, %v465
      %v472 = vld [vmem:[#allocation2 + $0x33] sm:$0xff]
      %v473 = vperm.slane %v293, 2
      %v474 = vmul.f32 %v473, %v331
      %v475 = vmul.f32 %v473, %v332
      %v476 = vmul.f32 %v473, %v333
      %v477 = vmul.f32 %v473, %v334
      %v478 = vmul.f32 %v473, %v335
      %v479 = vmul.f32 %v473, %v472
      %v480 = vadd.f32 %v466, %v474
      %v481 = vadd.f32 %v467, %v475
      %v482 = vadd.f32 %v468, %v476
      %v483 = vadd.f32 %v469, %v477
      %v484 = vadd.f32 %v470, %v478
      %v485 = vadd.f32 %v471, %v479
      %v486 = vld [vmem:[#allocation2 + $0x34] sm:$0xff]
      %v487 = vperm.slane %v293, 3
      %v488 = vmul.f32 %v487, %v350
      %v489 = vmul.f32 %v487, %v351
      %v490 = vmul.f32 %v487, %v352
      %v491 = vmul.f32 %v487, %v353
      %v492 = vmul.f32 %v487, %v354
      %v493 = vmul.f32 %v487, %v486
      %v494 = vadd.f32 %v480, %v488
      %v495 = vadd.f32 %v481, %v489
      %v496 = vadd.f32 %v482, %v490
      %v497 = vadd.f32 %v483, %v491
      %v498 = vadd.f32 %v484, %v492
      %v499 = vadd.f32 %v485, %v493
      %v500 = vld [vmem:[#allocation2 + $0x35] sm:$0xff]
      %v501 = vperm.slane %v293, 4
      %v502 = vmul.f32 %v501, %v369
      %v503 = vmul.f32 %v501, %v370
      %v504 = vmul.f32 %v501, %v371
      %v505 = vmul.f32 %v501, %v372
      %v506 = vmul.f32 %v501, %v373
      %v507 = vmul.f32 %v501, %v500
      %v508 = vadd.f32 %v494, %v502
      %v509 = vadd.f32 %v495, %v503
      %v510 = vadd.f32 %v496, %v504
      %v511 = vadd.f32 %v497, %v505
      %v512 = vadd.f32 %v498, %v506
      %v513 = vadd.f32 %v499, %v507
      %v514 = vld [vmem:[#allocation2 + $0x36] sm:$0xff]
      %v515 = vperm.slane %v293, 5
      %v516 = vmul.f32 %v515, %v388
      %v517 = vmul.f32 %v515, %v389
      %v518 = vmul.f32 %v515, %v390
      %v519 = vmul.f32 %v515, %v391
      %v520 = vmul.f32 %v515, %v392
      %v521 = vmul.f32 %v515, %v514
      %v522 = vadd.f32 %v508, %v516
      %v523 = vadd.f32 %v509, %v517
      %v524 = vadd.f32 %v510, %v518
      %v525 = vadd.f32 %v511, %v519
      %v526 = vadd.f32 %v512, %v520
      %v527 = vadd.f32 %v513, %v521
      %v528 = vld [vmem:[#allocation2 + $0x37] sm:$0xff]
      %v529 = vperm.slane %v293, 6
      %v530 = vmul.f32 %v529, %v407
      %v531 = vmul.f32 %v529, %v408
      %v532 = vmul.f32 %v529, %v409
      %v533 = vmul.f32 %v529, %v410
      %v534 = vmul.f32 %v529, %v411
      %v535 = vmul.f32 %v529, %v528
      %v536 = vadd.f32 %v522, %v530
      %v537 = vadd.f32 %v523, %v531
      %v538 = vadd.f32 %v524, %v532
      %v539 = vadd.f32 %v525, %v533
      %v540 = vadd.f32 %v526, %v534
      %v541 = vadd.f32 %v527, %v535
      %v542 = vld [vmem:[#allocation2 + $0x38] sm:$0xff]
      %v543 = vperm.slane %v293, 7
      %v544 = vmul.f32 %v543, %v426
      %v545 = vmul.f32 %v543, %v427
      %v546 = vmul.f32 %v543, %v428
      %v547 = vmul.f32 %v543, %v429
      %v548 = vmul.f32 %v543, %v430
      %v549 = vmul.f32 %v543, %v542
      %v550 = vadd.f32 %v536, %v544
      %v551 = vadd.f32 %v537, %v545
      %v552 = vadd.f32 %v538, %v546
      %v553 = vadd.f32 %v539, %v547
      %v554 = vadd.f32 %v540, %v548
      %v555 = vadd.f32 %v541, %v549
      %v556 = vld [vmem:[#allocation2 + $0x39] sm:$0xff]
      %v557 = vperm.slane %v294, 0
      %v558 = vmul.f32 %v557, %v300
      %v559 = vmul.f32 %v557, %v301
      %v560 = vmul.f32 %v557, %v302
      %v561 = vmul.f32 %v557, %v303
      %v562 = vmul.f32 %v557, %v444
      %v563 = vmul.f32 %v557, %v556
      %v564 = vadd.f32 %v550, %v558
      %v565 = vadd.f32 %v551, %v559
      %v566 = vadd.f32 %v552, %v560
      %v567 = vadd.f32 %v553, %v561
      %v568 = vadd.f32 %v554, %v562
      %v569 = vadd.f32 %v555, %v563
      %v570 = vld [vmem:[#allocation2 + $0x3a] sm:$0xff]
      %v571 = vperm.slane %v294, 1
      %v572 = vmul.f32 %v571, %v313
      %v573 = vmul.f32 %v571, %v314
      %v574 = vmul.f32 %v571, %v315
      %v575 = vmul.f32 %v571, %v316
      %v576 = vmul.f32 %v571, %v458
      %v577 = vmul.f32 %v571, %v570
      %v578 = vadd.f32 %v564, %v572
      %v579 = vadd.f32 %v565, %v573
      %v580 = vadd.f32 %v566, %v574
      %v581 = vadd.f32 %v567, %v575
      %v582 = vadd.f32 %v568, %v576
      %v583 = vadd.f32 %v569, %v577
      %v584 = vld [vmem:[#allocation2 + $0x3b] sm:$0xff]
      %v585 = vperm.slane %v294, 2
      %v586 = vmul.f32 %v585, %v332
      %v587 = vmul.f32 %v585, %v333
      %v588 = vmul.f32 %v585, %v334
      %v589 = vmul.f32 %v585, %v335
      %v590 = vmul.f32 %v585, %v472
      %v591 = vmul.f32 %v585, %v584
      %v592 = vadd.f32 %v578, %v586
      %v593 = vadd.f32 %v579, %v587
      %v594 = vadd.f32 %v580, %v588
      %v595 = vadd.f32 %v581, %v589
      %v596 = vadd.f32 %v582, %v590
      %v597 = vadd.f32 %v583, %v591
      %v598 = vld [vmem:[#allocation2 + $0x3c] sm:$0xff]
      %v599 = vperm.slane %v294, 3
      %v600 = vmul.f32 %v599, %v351
      %v601 = vmul.f32 %v599, %v352
      %v602 = vmul.f32 %v599, %v353
      %v603 = vmul.f32 %v599, %v354
      %v604 = vmul.f32 %v599, %v486
      %v605 = vmul.f32 %v599, %v598
      %v606 = vadd.f32 %v592, %v600
      %v607 = vadd.f32 %v593, %v601
      %v608 = vadd.f32 %v594, %v602
      %v609 = vadd.f32 %v595, %v603
      %v610 = vadd.f32 %v596, %v604
      %v611 = vadd.f32 %v597, %v605
      %v612 = vld [vmem:[#allocation2 + $0x3d] sm:$0xff]
      %v613 = vperm.slane %v294, 4
      %v614 = vmul.f32 %v613, %v370
      %v615 = vmul.f32 %v613, %v371
      %v616 = vmul.f32 %v613, %v372
      %v617 = vmul.f32 %v613, %v373
      %v618 = vmul.f32 %v613, %v500
      %v619 = vmul.f32 %v613, %v612
      %v620 = vadd.f32 %v606, %v614
      %v621 = vadd.f32 %v607, %v615
      %v622 = vadd.f32 %v608, %v616
      %v623 = vadd.f32 %v609, %v617
      %v624 = vadd.f32 %v610, %v618
      %v625 = vadd.f32 %v611, %v619
      %v626 = vld [vmem:[#allocation2 + $0x3e] sm:$0xff]
      %v627 = vperm.slane %v294, 5
      %v628 = vmul.f32 %v627, %v389
      %v629 = vmul.f32 %v627, %v390
      %v630 = vmul.f32 %v627, %v391
      %v631 = vmul.f32 %v627, %v392
      %v632 = vmul.f32 %v627, %v514
      %v633 = vmul.f32 %v627, %v626
      %v634 = vadd.f32 %v620, %v628
      %v635 = vadd.f32 %v621, %v629
      %v636 = vadd.f32 %v622, %v630
      %v637 = vadd.f32 %v623, %v631
      %v638 = vadd.f32 %v624, %v632
      %v639 = vadd.f32 %v625, %v633
      %v640 = vld [vmem:[#allocation2 + $0x3f] sm:$0xff]
      %v641 = vperm.slane %v294, 6
      %v642 = vmul.f32 %v641, %v408
      %v643 = vmul.f32 %v641, %v409
      %v644 = vmul.f32 %v641, %v410
      %v645 = vmul.f32 %v641, %v411
      %v646 = vmul.f32 %v641, %v528
      %v647 = vmul.f32 %v641, %v640
      %v648 = vadd.f32 %v634, %v642
      %v649 = vadd.f32 %v635, %v643
      %v650 = vadd.f32 %v636, %v644
      %v651 = vadd.f32 %v637, %v645
      %v652 = vadd.f32 %v638, %v646
      %v653 = vadd.f32 %v639, %v647
      %v654 = vld [vmem:[#allocation2 + $0x40] sm:$0xff]
      %v655 = vperm.slane %v294, 7
      %v656 = vmul.f32 %v655, %v427
      %v657 = vmul.f32 %v655, %v428
      %v658 = vmul.f32 %v655, %v429
      %v659 = vmul.f32 %v655, %v430
      %v660 = vmul.f32 %v655, %v542
      %v661 = vmul.f32 %v655, %v654
      %v662 = vadd.f32 %v648, %v656
      %v663 = vadd.f32 %v649, %v657
      %v664 = vadd.f32 %v650, %v658
      %v665 = vadd.f32 %v651, %v659
      %v666 = vadd.f32 %v652, %v660
      %v667 = vadd.f32 %v653, %v661
      %v668 = vld [vmem:[#allocation2 + $0x41] sm:$0xff]
      %v669 = vperm.slane %v295, 0
      %v670 = vmul.f32 %v669, %v301
      %v671 = vmul.f32 %v669, %v302
      %v672 = vmul.f32 %v669, %v303
      %v673 = vmul.f32 %v669, %v444
      %v674 = vmul.f32 %v669, %v556
      %v675 = vmul.f32 %v669, %v668
      %v676 = vadd.f32 %v662, %v670
      %v677 = vadd.f32 %v663, %v671
      %v678 = vadd.f32 %v664, %v672
      %v679 = vadd.f32 %v665, %v673
      %v680 = vadd.f32 %v666, %v674
      %v681 = vadd.f32 %v667, %v675
      %v682 = vld [vmem:[#allocation2 + $0x42] sm:$0xff]
      %v683 = vperm.slane %v295, 1
      %v684 = vmul.f32 %v683, %v314
      %v685 = vmul.f32 %v683, %v315
      %v686 = vmul.f32 %v683, %v316
      %v687 = vmul.f32 %v683, %v458
      %v688 = vmul.f32 %v683, %v570
      %v689 = vmul.f32 %v683, %v682
      %v690 = vadd.f32 %v676, %v684
      %v691 = vadd.f32 %v677, %v685
      %v692 = vadd.f32 %v678, %v686
      %v693 = vadd.f32 %v679, %v687
      %v694 = vadd.f32 %v680, %v688
      %v695 = vadd.f32 %v681, %v689
      %v696 = vld [vmem:[#allocation2 + $0x43] sm:$0xff]
      %v697 = vperm.slane %v295, 2
      %v698 = vmul.f32 %v697, %v333
      %v699 = vmul.f32 %v697, %v334
      %v700 = vmul.f32 %v697, %v335
      %v701 = vmul.f32 %v697, %v472
      %v702 = vmul.f32 %v697, %v584
      %v703 = vmul.f32 %v697, %v696
      %v704 = vadd.f32 %v690, %v698
      %v705 = vadd.f32 %v691, %v699
      %v706 = vadd.f32 %v692, %v700
      %v707 = vadd.f32 %v693, %v701
      %v708 = vadd.f32 %v694, %v702
      %v709 = vadd.f32 %v695, %v703
      %v710 = vld [vmem:[#allocation2 + $0x44] sm:$0xff]
      %v711 = vperm.slane %v295, 3
      %v712 = vmul.f32 %v711, %v352
      %v713 = vmul.f32 %v711, %v353
      %v714 = vmul.f32 %v711, %v354
      %v715 = vmul.f32 %v711, %v486
      %v716 = vmul.f32 %v711, %v598
      %v717 = vmul.f32 %v711, %v710
      %v718 = vadd.f32 %v704, %v712
      %v719 = vadd.f32 %v705, %v713
      %v720 = vadd.f32 %v706, %v714
      %v721 = vadd.f32 %v707, %v715
      %v722 = vadd.f32 %v708, %v716
      %v723 = vadd.f32 %v709, %v717
      %v724 = vld [vmem:[#allocation2 + $0x45] sm:$0xff]
      %v725 = vperm.slane %v295, 4
      %v726 = vmul.f32 %v725, %v371
      %v727 = vmul.f32 %v725, %v372
      %v728 = vmul.f32 %v725, %v373
      %v729 = vmul.f32 %v725, %v500
      %v730 = vmul.f32 %v725, %v612
      %v731 = vmul.f32 %v725, %v724
      %v732 = vadd.f32 %v718, %v726
      %v733 = vadd.f32 %v719, %v727
      %v734 = vadd.f32 %v720, %v728
      %v735 = vadd.f32 %v721, %v729
      %v736 = vadd.f32 %v722, %v730
      %v737 = vadd.f32 %v723, %v731
      %v738 = vld [vmem:[#allocation2 + $0x46] sm:$0xff]
      %v739 = vperm.slane %v295, 5
      %v740 = vmul.f32 %v739, %v390
      %v741 = vmul.f32 %v739, %v391
      %v742 = vmul.f32 %v739, %v392
      %v743 = vmul.f32 %v739, %v514
      %v744 = vmul.f32 %v739, %v626
      %v745 = vmul.f32 %v739, %v738
      %v746 = vadd.f32 %v732, %v740
      %v747 = vadd.f32 %v733, %v741
      %v748 = vadd.f32 %v734, %v742
      %v749 = vadd.f32 %v735, %v743
      %v750 = vadd.f32 %v736, %v744
      %v751 = vadd.f32 %v737, %v745
      %v752 = vld [vmem:[#allocation2 + $0x47] sm:$0xff]
      %v753 = vperm.slane %v295, 6
      %v754 = vmul.f32 %v753, %v409
      %v755 = vmul.f32 %v753, %v410
      %v756 = vmul.f32 %v753, %v411
      %v757 = vmul.f32 %v753, %v528
      %v758 = vmul.f32 %v753, %v640
      %v759 = vmul.f32 %v753, %v752
      %v760 = vadd.f32 %v746, %v754
      %v761 = vadd.f32 %v747, %v755
      %v762 = vadd.f32 %v748, %v756
      %v763 = vadd.f32 %v749, %v757
      %v764 = vadd.f32 %v750, %v758
      %v765 = vadd.f32 %v751, %v759
      %v767 = vperm.slane %v296, 0
      %v769 = vmul.f32 %v760, %v767
      %v770 = vmul.f32 %v761, %v767
      %v771 = vmul.f32 %v762, %v767
      %v772 = vmul.f32 %v763, %v767
      %v773 = vmul.f32 %v764, %v767
      %v774 = vmul.f32 %v765, %v767
      %v776 = vperm.slane %v297, 0
      %v778 = vadd.f32 %v769, %v776
      %v779 = vadd.f32 %v770, %v776
      %v780 = vadd.f32 %v771, %v776
      %v781 = vadd.f32 %v772, %v776
      %v782 = vadd.f32 %v773, %v776
      %v783 = vadd.f32 %v774, %v776
      %784 = vst.msk [vmem:[%s273] sm:$0xff] %vm274, %v778
      %785 = vst.msk [vmem:[%s273 + $0x8] sm:$0xff] %vm274, %v779
      %786 = vst.msk [vmem:[%s273 + $0x10] sm:$0xff] %vm274, %v780
      %787 = vst.msk [vmem:[%s273 + $0x18] sm:$0xff] %vm274, %v781
      %788 = vst.msk [vmem:[%s273 + $0x20] sm:$0xff] %vm274, %v782
      %789 = vst.msk [vmem:[%s273 + $0x28] sm:$0xff] %vm274, %v783
      %p790 = scmp.lt.s32.totalorder %s20, 1
      %s791 = scalar_select %p790, %s20, 1
      %p792 = scmp.lt.s32.totalorder %s19, 0
      %s793 = scalar_select %p792, %s19, 0
      %s794 = smul.addr %s791, 6
      %s795 = sadd.s32 %s793, %s794
      %s796 = smul.addr %s795, 8
      %s797 = scalar_lea.vmem %s4, %s796
      // Predicated region
      $region37: #{tpu_custom_call.1} parent=35 // pred_check
        %p798 = pneg %p153
      $region38: #{tpu_custom_call.1} parent=35 // pred_check_branch
        %800 = sbr.rel (%p798) target = $region40
      $region39: #{tpu_custom_call.1} parent=35 // pred_region
        _
      $region40: #{tpu_custom_call.1} parent=35 // pred_fallthru
        _
    $region36: #{tpu_custom_call.1} parent=5 // pred_fallthru
      _
    %p801 = scmp.le.s32.totalorder 2, %s10
    // Predicated region
    $region41: #{tpu_custom_call.1} parent=5 // pred_check
      %p802 = pneg %p801
    $region42: #{tpu_custom_call.1} parent=5 // pred_check_branch
      %804 = sbr.rel (%p802) target = $region44
    $region43: #{tpu_custom_call.1} parent=5 // pred_region
      %s805 = ssub.s32 %s10, 2
      // Predicated region
      $region45: #{tpu_custom_call.1} parent=43 // pred_check
        %p806 = pneg %p159
      $region46: #{tpu_custom_call.1} parent=43 // pred_check_branch
        %808 = sbr.rel (%p806) target = $region48
      $region47: #{tpu_custom_call.1} parent=43 // pred_region
        %p809 = scmp.lt.s32.totalorder %s22, 1
        %s810 = scalar_select %p809, %s22, 1
        %p811 = scmp.lt.s32.totalorder %s21, 0
        %s812 = scalar_select %p811, %s21, 0
        %s813 = smul.addr %s810, 6
        %s814 = sadd.s32 %s812, %s813
        %s815 = smul.addr %s814, 8
        %s816 = scalar_lea.vmem %s4, %s815
      $region48: #{tpu_custom_call.1} parent=43 // pred_fallthru
        _
    $region44: #{tpu_custom_call.1} parent=5 // pred_fallthru
      _
  $region6: #{tpu_custom_call.1} parent=0 // loop_footer
    %s14 = sadd.s32 1, %s10
  $region7: #{tpu_custom_call.1} parent=0 // loop_footer_branch
    %9 = sbr.rel target = $region3
  $region8: #{tpu_custom_call.1} parent=0 // loop_exit
    _

</llo_original>
